<compile_context>
chip_gen: v7x
topology: tpu7x:2x2x1
jax: 0.10.0
libtpu: 0.0.40
codegen_flags: <defaults>
</compile_context>

<pallas_src>
import functools

import jax
import jax.numpy as jnp
from jax.experimental import pallas as pl
from jax.experimental.pallas import tpu as pltpu


def _round_up(n, m):
    return ((n + m - 1) // m) * m


def _mlp_kernel(x_ref, w_ref, b_ref, o_ref, *, num_layers, compute_dtype):
    """Fused MLP on one (TB, P) activation tile.

    x_ref: (TB, P)      activation tile (P = lane-dense padded feature width)
    w_ref: (L, P, P)    all layer weights, pre-transposed (in, out), zero-padded
    b_ref: (L, P)       all layer biases, zero-padded
    o_ref: (TB, P)      final activations (padded)
    """
    h = x_ref[...]
    for l in range(num_layers):
        y = jnp.dot(
            h.astype(compute_dtype),
            w_ref[l].astype(compute_dtype),
            preferred_element_type=jnp.float32,
        )
        y = y + b_ref[l : l + 1, :]          # (1, P) broadcast over batch, f32
        if l < num_layers - 1:
            h = jnp.maximum(y, 0.0)          # ReLU (f32 VPU)
        else:
            h = jax.nn.sigmoid(y)            # sigmoid (f32, EUP exp/recip)
    o_ref[...] = h.astype(o_ref.dtype)


def prepare_params(params):
    """One-time param prep: transpose to (in, out), pad to lane-dense P, stack.

    params: list of (w, b) with PyTorch nn.Linear layout w:(out,in), b:(out,).
    Returns (w_slab (L,P,P) f32, b_slab (L,P) f32).
    Zero padding is exact: padded input cols hit zero weight rows, padded
    output cols get 0 + 0 bias -> ReLU(0)=0 feeds the next layer correctly.
    """
    L = len(params)
    P = max(_round_up(max(w.shape[0], w.shape[1]), 128) for w, _ in params)
    w_slab = jnp.zeros((L, P, P), jnp.float32)
    b_slab = jnp.zeros((L, P), jnp.float32)
    for l, (w, b) in enumerate(params):
        out_f, in_f = w.shape
        w_slab = w_slab.at[l, :in_f, :out_f].set(w.T.astype(jnp.float32))
        b_slab = b_slab.at[l, :out_f].set(b.astype(jnp.float32))
    return w_slab, b_slab


@functools.partial(jax.jit, static_argnames=("out_features",))
def net_forward(x, w_slab, b_slab, *, out_features):
    """Mirror of Net.forward: ReLU on all layers except last, sigmoid on last."""
    B, Din = x.shape
    L, P, _ = w_slab.shape

    # Batch tiling: multiple of 8 sublanes, capped at 512 rows per tile so the
    # activation tile + resident weight slab stay well inside scoped VMEM
    # (also on v7x's 64 MiB). Weights are re-used across batch tiles.
    TB = min(512, _round_up(B, 8))
    Bpad = _round_up(B, TB)

    x_pad = jnp.zeros((Bpad, P), jnp.float32).at[:B, :Din].set(
        x.astype(jnp.float32)
    )

    kernel = functools.partial(
        _mlp_kernel, num_layers=L, compute_dtype=jnp.float32
    )

    out_pad = pl.pallas_call(
        kernel,
        out_shape=jax.ShapeDtypeStruct((Bpad, P), jnp.float32),
        grid=(Bpad // TB,),
        in_specs=[
            pl.BlockSpec((TB, P), lambda i: (i, 0)),        # activations: tiled
            pl.BlockSpec((L, P, P), lambda i: (0, 0, 0)),   # weights: resident
            pl.BlockSpec((L, P), lambda i: (0, 0)),         # biases: resident
        ],
        out_specs=pl.BlockSpec((TB, P), lambda i: (i, 0)),
        compiler_params=pltpu.CompilerParams(
            dimension_semantics=("parallel",),              # megacore over batch
        ),
    )(x_pad, w_slab, b_slab)

    return out_pad[:B, :out_features]


def init_params(sizes, key):
    """Deterministic init matching nn.Linear shapes: W (out, in), b (out,)."""
    params = []
    for in_f, out_f in zip(sizes, sizes[1:]):
        key, kw, kb = jax.random.split(key, 3)
        bound = 1.0 / jnp.sqrt(in_f)
        w = jax.random.uniform(kw, (out_f, in_f), jnp.float32, -bound, bound)
        b = jax.random.uniform(kb, (out_f,), jnp.float32, -bound, bound)
        params.append((w, b))
    return params


def net_reference(x, params):
    """Pure-JAX reference of Net.forward for correctness checking."""
    n = len(params)
    for i, (w, b) in enumerate(params):
        x = x @ w.T + b
        x = jnp.maximum(x, 0.0) if i < n - 1 else jax.nn.sigmoid(x)
    return x


if __name__ == "__main__":
    key = jax.random.PRNGKey(0)
    sizes = [32, 64, 32, 16]          # Net(sizes) -> 3 Linear layers
    batch = 8

    kx, kp = jax.random.split(key)
    x = jax.random.normal(kx, (batch, sizes[0]), jnp.float32)
    params = init_params(sizes, kp)

    # One-time parameter prep (transpose / pad / stack) -- not per forward call.
    w_slab, b_slab = prepare_params(params)

    out = net_forward(x, w_slab, b_slab, out_features=sizes[-1])
    jax.block_until_ready(out)

    assert out.shape == (batch, sizes[-1])
    assert bool(jnp.all((out >= 0.0) & (out <= 1.0)))  # sigmoid range sanity check

    ref = net_reference(x, params)
    assert jnp.allclose(out, ref, atol=1e-4, rtol=1e-4), (
        float(jnp.max(jnp.abs(out - ref)))
    )

    print("KERNEL_OK")
</pallas_src>

<mosaic_0001>
module attributes {stable_mosaic.version = 11 : i64} {
  func.func @_mlp_kernel(%arg0: i32, %arg1: memref<8x128xf32, #tpu.memory_space<vmem>>, %arg2: memref<3x128x128xf32, #tpu.memory_space<vmem>>, %arg3: memref<3x128xf32, #tpu.memory_space<vmem>>, %arg4: memref<8x128xf32, #tpu.memory_space<vmem>>) attributes {dimension_semantics = [#tpu.dimension_semantics<parallel>], iteration_bounds = array<i64: 1>, scalar_prefetch = 0 : i64, scratch_operands = 0 : i64, tpu.core_type = #tpu.core_type<tc>, window_params = [{transform_indices = @transform_0, window_bounds = array<i64: 8, 128>}, {pipeline_mode = #tpu.pipeline_mode<synchronous>, transform_indices = @transform_1, window_bounds = array<i64: 3, 128, 128>}, {pipeline_mode = #tpu.pipeline_mode<synchronous>, transform_indices = @transform_2, window_bounds = array<i64: 3, 128>}, {transform_indices = @transform_3, window_bounds = array<i64: 8, 128>}]} {
    %c0 = arith.constant 0 : index
    %c0_0 = arith.constant 0 : index
    %0 = vector.load %arg1[%c0, %c0_0] : memref<8x128xf32, #tpu.memory_space<vmem>>, vector<8x128xf32>
    %c0_1 = arith.constant 0 : index
    %c0_2 = arith.constant 0 : index
    %c0_3 = arith.constant 0 : index
    %1 = vector.load %arg2[%c0_1, %c0_2, %c0_3] : memref<3x128x128xf32, #tpu.memory_space<vmem>>, vector<1x128x128xf32>
    %2 = vector.shape_cast %1 : vector<1x128x128xf32> to vector<128x128xf32>
    %cst = arith.constant dense<0.000000e+00> : vector<8x128xf32>
    %3 = tpu.matmul %0, %2, %cst {dimension_numbers = #tpu.dot_dimension_numbers<[1], [0], [0], [1], [0, 0, 1, 1], [], []>} : vector<8x128xf32>, vector<128x128xf32>, vector<8x128xf32> -> vector<8x128xf32>
    %c0_4 = arith.constant 0 : index
    %c0_5 = arith.constant 0 : index
    %4 = vector.load %arg3[%c0_4, %c0_5] : memref<3x128xf32, #tpu.memory_space<vmem>>, vector<1x128xf32>
    %5 = vector.broadcast %4 : vector<1x128xf32> to vector<8x128xf32>
    %6 = arith.addf %3, %5 : vector<8x128xf32>
    %cst_6 = arith.constant 0.000000e+00 : f32
    %7 = vector.broadcast %cst_6 : f32 to vector<8x128xf32>
    %8 = arith.maximumf %6, %7 : vector<8x128xf32>
    %c1 = arith.constant 1 : index
    %c0_7 = arith.constant 0 : index
    %c0_8 = arith.constant 0 : index
    %9 = vector.load %arg2[%c1, %c0_7, %c0_8] : memref<3x128x128xf32, #tpu.memory_space<vmem>>, vector<1x128x128xf32>
    %10 = vector.shape_cast %9 : vector<1x128x128xf32> to vector<128x128xf32>
    %cst_9 = arith.constant dense<0.000000e+00> : vector<8x128xf32>
    %11 = tpu.matmul %8, %10, %cst_9 {dimension_numbers = #tpu.dot_dimension_numbers<[1], [0], [0], [1], [0, 0, 1, 1], [], []>} : vector<8x128xf32>, vector<128x128xf32>, vector<8x128xf32> -> vector<8x128xf32>
    %c1_10 = arith.constant 1 : index
    %c0_11 = arith.constant 0 : index
    %12 = vector.load %arg3[%c1_10, %c0_11] : memref<3x128xf32, #tpu.memory_space<vmem>>, vector<1x128xf32>
    %13 = vector.broadcast %12 : vector<1x128xf32> to vector<8x128xf32>
    %14 = arith.addf %11, %13 : vector<8x128xf32>
    %cst_12 = arith.constant 0.000000e+00 : f32
    %15 = vector.broadcast %cst_12 : f32 to vector<8x128xf32>
    %16 = arith.maximumf %14, %15 : vector<8x128xf32>
    %c2 = arith.constant 2 : index
    %c0_13 = arith.constant 0 : index
    %c0_14 = arith.constant 0 : index
    %17 = vector.load %arg2[%c2, %c0_13, %c0_14] : memref<3x128x128xf32, #tpu.memory_space<vmem>>, vector<1x128x128xf32>
    %18 = vector.shape_cast %17 : vector<1x128x128xf32> to vector<128x128xf32>
    %cst_15 = arith.constant dense<0.000000e+00> : vector<8x128xf32>
    %19 = tpu.matmul %16, %18, %cst_15 {dimension_numbers = #tpu.dot_dimension_numbers<[1], [0], [0], [1], [0, 0, 1, 1], [], []>} : vector<8x128xf32>, vector<128x128xf32>, vector<8x128xf32> -> vector<8x128xf32>
    %c2_16 = arith.constant 2 : index
    %c0_17 = arith.constant 0 : index
    %20 = vector.load %arg3[%c2_16, %c0_17] : memref<3x128xf32, #tpu.memory_space<vmem>>, vector<1x128xf32>
    %21 = vector.broadcast %20 : vector<1x128xf32> to vector<8x128xf32>
    %22 = arith.addf %19, %21 : vector<8x128xf32>
    %23 = arith.negf %22 : vector<8x128xf32>
    %24 = math.exp %23 : vector<8x128xf32>
    %cst_18 = arith.constant 1.000000e+00 : f32
    %25 = vector.broadcast %cst_18 : f32 to vector<8x128xf32>
    %26 = arith.addf %25, %24 : vector<8x128xf32>
    %27 = arith.divf %25, %26 : vector<8x128xf32>
    %c0_19 = arith.constant 0 : index
    %c0_20 = arith.constant 0 : index
    %28 = vector.load %arg4[%c0_19, %c0_20] : memref<8x128xf32, #tpu.memory_space<vmem>>, vector<8x128xf32>
    tpu.vector_store %arg4[%c0_19, %c0_20], %27 {strides = array<i32>} : memref<8x128xf32, #tpu.memory_space<vmem>>, vector<8x128xf32>,
    return
  }
  func.func @transform_0(%arg0: i32) -> (i32, i32) {
    %c0_i32 = arith.constant 0 : i32
    %c0_i32_0 = arith.constant 0 : i32
    return %arg0, %c0_i32 : i32, i32
  }
  func.func @transform_1(%arg0: i32) -> (i32, i32, i32) {
    %c0_i32 = arith.constant 0 : i32
    %c0_i32_0 = arith.constant 0 : i32
    %c0_i32_1 = arith.constant 0 : i32
    %c0_i32_2 = arith.constant 0 : i32
    return %c0_i32, %c0_i32_0, %c0_i32_1 : i32, i32, i32
  }
  func.func @transform_2(%arg0: i32) -> (i32, i32) {
    %c0_i32 = arith.constant 0 : i32
    %c0_i32_0 = arith.constant 0 : i32
    %c0_i32_1 = arith.constant 0 : i32
    return %c0_i32, %c0_i32_0 : i32, i32
  }
  func.func @transform_3(%arg0: i32) -> (i32, i32) {
    %c0_i32 = arith.constant 0 : i32
    %c0_i32_0 = arith.constant 0 : i32
    return %arg0, %c0_i32 : i32, i32
  }
}

</mosaic_0001>

<llo_original>
// kernel: net_forward.1
$region0: #{net_forward.1}
  #allocation0 [shape = 'u32[]', space=smem, size = 0x4, offset = 0x4, fixed_abs, tag = 'smem constant byte address 0x4 - core index']
  #allocation1 [shape = 'u32[144,128]{1,0:T(1,128)}', space=vmem, size = 0x12000, scoped, tag = 'internal scratch']
  %s0 = inlined_call_operand.vmem [shape: f32[8,128], index: 0, kind: input, shape index: {}]
  %s1 = inlined_call_operand.hbm [shape: f32[3,128,128], index: 1, kind: input, shape index: {}]
  %s2 = inlined_call_operand.vmem [shape: f32[3,128], index: 2, kind: input, shape index: {}]
  %s3 = inlined_call_operand.hbm [shape: f32[8,128], index: 3, kind: output, shape index: {}]
  %s4 = sld [smem:[#allocation0]]
  $region26: #{net_forward.1} parent=0
    _
  %s6 = ssub.s32 1, %s4
  %s7 = scalar_select 0, %s6, %s4
  $region1: #{net_forward.1} parent=0
    #allocation2 [shape = 'u8[196608]{0}', space=vmem, size = 0x30000, scoped, tag = 'input window, operand 1, single buffered']
    #allocation3 [shape = 's32[1]{0}', space=sflag, size = 0x4, scoped, tag = 'scoped memory for net_forward.1']
    #allocation4 [shape = 's32[1]{0}', space=sflag, size = 0x4, scoped, tag = 'scoped memory for net_forward.1']
    #allocation5 [shape = 'u8[4096]{0}', space=vmem, size = 0x1000, scoped, tag = 'output window, operand 0, single buffered']
    %8 = vsyncpa [#allocation3], 0
    %9 = vsyncpa [#allocation4], 0
    // Predicated region
    $region2: #{net_forward.1} parent=1 // pred_check
      _
    $region3: #{net_forward.1} parent=1 // pred_check_branch
      %11 = sbr.rel (0) target = $region5
    $region4: #{net_forward.1} parent=1 // pred_region
      _
    $region5: #{net_forward.1} parent=1 // pred_fallthru
      _
    // Predicated region
    $region6: #{net_forward.1} parent=1 // pred_check
      _
    $region7: #{net_forward.1} parent=1 // pred_check_branch
      %13 = sbr.rel (0) target = $region9
    $region8: #{net_forward.1} parent=1 // pred_region
      %s15 = ssub.s32 6144, 6144
      %16 = vsyncadd [#allocation3], %s15
      %s17 = sshll.u32 [#allocation2], 4
      %s18 = int_to_ptr.vmem [resolvable:$true] %s17
      %23 = dma.hbm_to_vmem [thread:$0]  %s1, 6144, %s18, [#allocation3], 128, 128, 8
    $region9: #{net_forward.1} parent=1 // pred_fallthru
      _
    // Predicated region
    $region10: #{net_forward.1} parent=1 // pred_check
      _
    $region11: #{net_forward.1} parent=1 // pred_check_branch
      %25 = sbr.rel (0) target = $region13
    $region12: #{net_forward.1} parent=1 // pred_region
      _
    $region13: #{net_forward.1} parent=1 // pred_fallthru
      _
    // Predicated region
    $region14: #{net_forward.1} parent=1 // pred_check
      _
    $region15: #{net_forward.1} parent=1 // pred_check_branch
      %27 = sbr.rel (0) target = $region17
    $region16: #{net_forward.1} parent=1 // pred_region
      %28 = dma.done [#allocation3], 6144
    $region17: #{net_forward.1} parent=1 // pred_fallthru
      _
    %v29 = vld [vmem:[%s0] sm:$0xff]
    %v30 = vld [vmem:[#allocation2] sm:$0xff]
    %v31 = vld [vmem:[#allocation2 + $0x8] sm:$0xff]
    %v32 = vld [vmem:[#allocation2 + $0x10] sm:$0xff]
    %v33 = vld [vmem:[#allocation2 + $0x18] sm:$0xff]
    %v34 = vld [vmem:[#allocation2 + $0x20] sm:$0xff]
    %v35 = vld [vmem:[#allocation2 + $0x28] sm:$0xff]
    %v36 = vld [vmem:[#allocation2 + $0x30] sm:$0xff]
    %v37 = vld [vmem:[#allocation2 + $0x38] sm:$0xff]
    %v38 = vld [vmem:[#allocation2 + $0x40] sm:$0xff]
    %v39 = vld [vmem:[#allocation2 + $0x48] sm:$0xff]
    %v40 = vld [vmem:[#allocation2 + $0x50] sm:$0xff]
    %v41 = vld [vmem:[#allocation2 + $0x58] sm:$0xff]
    %v42 = vld [vmem:[#allocation2 + $0x60] sm:$0xff]
    %v43 = vld [vmem:[#allocation2 + $0x68] sm:$0xff]
    %v44 = vld [vmem:[#allocation2 + $0x70] sm:$0xff]
    %v45 = vld [vmem:[#allocation2 + $0x78] sm:$0xff]
    %v46 = vld [vmem:[%s2] sm:$0x1]
    %v47 = vlaneseq
    %v48 = vshrl.u32 %v47, 7
    %v49 = vsub.s32 0, %v48
    %v50 = vrot.slane %v46, %v49
    %51 = vmatprep.subr.mxu0 0.0
    %52 = vmatpush1.msra.mxu0 %v30
    %53 = vmatprep.subr.mxu0 0.0
    %54 = vmatpush1.msra.mxu0 %v31
    %55 = vmatprep.subr.mxu0 0.0
    %56 = vmatpush1.msra.mxu0 %v32
    %57 = vmatprep.subr.mxu0 0.0
    %58 = vmatpush1.msra.mxu0 %v33
    %59 = vmatprep.subr.mxu0 0.0
    %60 = vmatpush1.msra.mxu0 %v34
    %61 = vmatprep.subr.mxu0 0.0
    %62 = vmatpush1.msra.mxu0 %v35
    %63 = vmatprep.subr.mxu0 0.0
    %64 = vmatpush1.msra.mxu0 %v36
    %65 = vmatprep.subr.mxu0 0.0
    %66 = vmatpush1.msra.mxu0 %v37
    %67 = vmatprep.subr.mxu0 0.0
    %68 = vmatpush1.msra.mxu0 %v38
    %69 = vmatprep.subr.mxu0 0.0
    %70 = vmatpush1.msra.mxu0 %v39
    %71 = vmatprep.subr.mxu0 0.0
    %72 = vmatpush1.msra.mxu0 %v40
    %73 = vmatprep.subr.mxu0 0.0
    %74 = vmatpush1.msra.mxu0 %v41
    %75 = vmatprep.subr.mxu0 0.0
    %76 = vmatpush1.msra.mxu0 %v42
    %77 = vmatprep.subr.mxu0 0.0
    %78 = vmatpush1.msra.mxu0 %v43
    %79 = vmatprep.subr.mxu0 0.0
    %80 = vmatpush1.msra.mxu0 %v44
    %81 = vmatprep.subr.mxu0 0.0
    %82 = vmatpush1.msra.mxu0 %v45
    %83 = vmatprep.subr.mxu0 0.0
    %84 = vmatpush1.msra.mxu0 0.0
    %85 = vmatprep.subr.mxu0 0.0
    %86 = vmatpush1.msra.mxu0 0.0
    %87 = vmatprep.subr.mxu0 0.0
    %88 = vmatpush1.msra.mxu0 0.0
    %89 = vmatprep.subr.mxu0 0.0
    %90 = vmatpush1.msra.mxu0 0.0
    %91 = vmatprep.subr.mxu0 0.0
    %92 = vmatpush1.msra.mxu0 0.0
    %93 = vmatprep.subr.mxu0 0.0
    %94 = vmatpush1.msra.mxu0 0.0
    %95 = vmatprep.subr.mxu0 0.0
    %96 = vmatpush1.msra.mxu0 0.0
    %97 = vmatprep.subr.mxu0 0.0
    %98 = vmatpush1.msra.mxu0 0.0
    %99 = vmatprep.subr.mxu0 0.0
    %100 = vmatpush1.msra.mxu0 0.0
    %101 = vmatprep.subr.mxu0 0.0
    %102 = vmatpush1.msra.mxu0 0.0
    %103 = vmatprep.subr.mxu0 0.0
    %104 = vmatpush1.msra.mxu0 0.0
    %105 = vmatprep.subr.mxu0 0.0
    %106 = vmatpush1.msra.mxu0 0.0
    %107 = vmatprep.subr.mxu0 0.0
    %108 = vmatpush1.msra.mxu0 0.0
    %109 = vmatprep.subr.mxu0 0.0
    %110 = vmatpush1.msra.mxu0 0.0
    %111 = vmatprep.subr.mxu0 0.0
    %112 = vmatpush1.msra.mxu0 0.0
    %113 = vmatprep.subr.mxu0 0.0
    %114 = vmatpush1.msra.mxu0 0.0
    %115 = vmatprep.mubr.f32.mxu0 0.0
    %116 = vmatmul.mubr.f32.gmra.mrb[0].mxu0 %v29
    %v117 = vpop.f32.mrb[0].mxu0
    %v118 = vadd.f32 %v50, %v117
    %v119 = vpop.f32.mrb[0].mxu0
    %120 = vdwg.mxu0
    %v121 = vmax.f32 %v118, 0.0
    %s122 = scalar_lea.vmem [#allocation2], 128
    %v123 = vld [vmem:[%s122] sm:$0xff]
    %v124 = vld [vmem:[%s122 + $0x8] sm:$0xff]
    %v125 = vld [vmem:[%s122 + $0x10] sm:$0xff]
    %v126 = vld [vmem:[%s122 + $0x18] sm:$0xff]
    %v127 = vld [vmem:[%s122 + $0x20] sm:$0xff]
    %v128 = vld [vmem:[%s122 + $0x28] sm:$0xff]
    %v129 = vld [vmem:[%s122 + $0x30] sm:$0xff]
    %v130 = vld [vmem:[%s122 + $0x38] sm:$0xff]
    %v131 = vld [vmem:[%s122 + $0x40] sm:$0xff]
    %v132 = vld [vmem:[%s122 + $0x48] sm:$0xff]
    %v133 = vld [vmem:[%s122 + $0x50] sm:$0xff]
    %v134 = vld [vmem:[%s122 + $0x58] sm:$0xff]
    %v135 = vld [vmem:[%s122 + $0x60] sm:$0xff]
    %v136 = vld [vmem:[%s122 + $0x68] sm:$0xff]
    %v137 = vld [vmem:[%s122 + $0x70] sm:$0xff]
    %v138 = vld [vmem:[%s122 + $0x78] sm:$0xff]
    %v139 = vld [vmem:[%s2 + $0x1] sm:$0x1]
    %v140 = vlaneseq
    %v141 = vshrl.u32 %v140, 7
    %v142 = vsub.s32 0, %v141
    %v143 = vrot.slane %v139, %v142
    %144 = vmatprep.subr.mxu0 0.0
    %145 = vmatpush1.msra.mxu0 %v123
    %146 = vmatprep.subr.mxu0 0.0
    %147 = vmatpush1.msra.mxu0 %v124
    %148 = vmatprep.subr.mxu0 0.0
    %149 = vmatpush1.msra.mxu0 %v125
    %150 = vmatprep.subr.mxu0 0.0
    %151 = vmatpush1.msra.mxu0 %v126
    %152 = vmatprep.subr.mxu0 0.0
    %153 = vmatpush1.msra.mxu0 %v127
    %154 = vmatprep.subr.mxu0 0.0
    %155 = vmatpush1.msra.mxu0 %v128
    %156 = vmatprep.subr.mxu0 0.0
    %157 = vmatpush1.msra.mxu0 %v129
    %158 = vmatprep.subr.mxu0 0.0
    %159 = vmatpush1.msra.mxu0 %v130
    %160 = vmatprep.subr.mxu0 0.0
    %161 = vmatpush1.msra.mxu0 %v131
    %162 = vmatprep.subr.mxu0 0.0
    %163 = vmatpush1.msra.mxu0 %v132
    %164 = vmatprep.subr.mxu0 0.0
    %165 = vmatpush1.msra.mxu0 %v133
    %166 = vmatprep.subr.mxu0 0.0
    %167 = vmatpush1.msra.mxu0 %v134
    %168 = vmatprep.subr.mxu0 0.0
    %169 = vmatpush1.msra.mxu0 %v135
    %170 = vmatprep.subr.mxu0 0.0
    %171 = vmatpush1.msra.mxu0 %v136
    %172 = vmatprep.subr.mxu0 0.0
    %173 = vmatpush1.msra.mxu0 %v137
    %174 = vmatprep.subr.mxu0 0.0
    %175 = vmatpush1.msra.mxu0 %v138
    %176 = vmatprep.subr.mxu0 0.0
    %177 = vmatpush1.msra.mxu0 0.0
    %178 = vmatprep.subr.mxu0 0.0
    %179 = vmatpush1.msra.mxu0 0.0
    %180 = vmatprep.subr.mxu0 0.0
    %181 = vmatpush1.msra.mxu0 0.0
    %182 = vmatprep.subr.mxu0 0.0
    %183 = vmatpush1.msra.mxu0 0.0
    %184 = vmatprep.subr.mxu0 0.0
    %185 = vmatpush1.msra.mxu0 0.0
    %186 = vmatprep.subr.mxu0 0.0
    %187 = vmatpush1.msra.mxu0 0.0
    %188 = vmatprep.subr.mxu0 0.0
    %189 = vmatpush1.msra.mxu0 0.0
    %190 = vmatprep.subr.mxu0 0.0
    %191 = vmatpush1.msra.mxu0 0.0
    %192 = vmatprep.subr.mxu0 0.0
    %193 = vmatpush1.msra.mxu0 0.0
    %194 = vmatprep.subr.mxu0 0.0
    %195 = vmatpush1.msra.mxu0 0.0
    %196 = vmatprep.subr.mxu0 0.0
    %197 = vmatpush1.msra.mxu0 0.0
    %198 = vmatprep.subr.mxu0 0.0
    %199 = vmatpush1.msra.mxu0 0.0
    %200 = vmatprep.subr.mxu0 0.0
    %201 = vmatpush1.msra.mxu0 0.0
    %202 = vmatprep.subr.mxu0 0.0
    %203 = vmatpush1.msra.mxu0 0.0
    %204 = vmatprep.subr.mxu0 0.0
    %205 = vmatpush1.msra.mxu0 0.0
    %206 = vmatprep.subr.mxu0 0.0
    %207 = vmatpush1.msra.mxu0 0.0
    %208 = vmatprep.mubr.f32.mxu0 0.0
    %209 = vmatmul.mubr.f32.gmra.mrb[0].mxu0 %v121
    %v210 = vpop.f32.mrb[0].mxu0
    %v211 = vadd.f32 %v143, %v210
    %v212 = vpop.f32.mrb[0].mxu0
    %213 = vdwg.mxu0
    %v214 = vmax.f32 %v211, 0.0
    %s215 = scalar_lea.vmem [#allocation2], 256
    %v216 = vld [vmem:[%s215] sm:$0xff]
    %v217 = vld [vmem:[%s215 + $0x8] sm:$0xff]
    %v218 = vld [vmem:[%s215 + $0x10] sm:$0xff]
    %v219 = vld [vmem:[%s215 + $0x18] sm:$0xff]
    %v220 = vld [vmem:[%s215 + $0x20] sm:$0xff]
    %v221 = vld [vmem:[%s215 + $0x28] sm:$0xff]
    %v222 = vld [vmem:[%s215 + $0x30] sm:$0xff]
    %v223 = vld [vmem:[%s215 + $0x38] sm:$0xff]
    %v224 = vld [vmem:[%s215 + $0x40] sm:$0xff]
    %v225 = vld [vmem:[%s215 + $0x48] sm:$0xff]
    %v226 = vld [vmem:[%s215 + $0x50] sm:$0xff]
    %v227 = vld [vmem:[%s215 + $0x58] sm:$0xff]
    %v228 = vld [vmem:[%s215 + $0x60] sm:$0xff]
    %v229 = vld [vmem:[%s215 + $0x68] sm:$0xff]
    %v230 = vld [vmem:[%s215 + $0x70] sm:$0xff]
    %v231 = vld [vmem:[%s215 + $0x78] sm:$0xff]
    %v232 = vld [vmem:[%s2 + $0x2] sm:$0x1]
    %v233 = vlaneseq
    %v234 = vshrl.u32 %v233, 7
    %v235 = vsub.s32 0, %v234
    %v236 = vrot.slane %v232, %v235
    %237 = vmatprep.subr.mxu0 0.0
    %238 = vmatpush1.msra.mxu0 %v216
    %239 = vmatprep.subr.mxu0 0.0
    %240 = vmatpush1.msra.mxu0 %v217
    %241 = vmatprep.subr.mxu0 0.0
    %242 = vmatpush1.msra.mxu0 %v218
    %243 = vmatprep.subr.mxu0 0.0
    %244 = vmatpush1.msra.mxu0 %v219
    %245 = vmatprep.subr.mxu0 0.0
    %246 = vmatpush1.msra.mxu0 %v220
    %247 = vmatprep.subr.mxu0 0.0
    %248 = vmatpush1.msra.mxu0 %v221
    %249 = vmatprep.subr.mxu0 0.0
    %250 = vmatpush1.msra.mxu0 %v222
    %251 = vmatprep.subr.mxu0 0.0
    %252 = vmatpush1.msra.mxu0 %v223
    %253 = vmatprep.subr.mxu0 0.0
    %254 = vmatpush1.msra.mxu0 %v224
    %255 = vmatprep.subr.mxu0 0.0
    %256 = vmatpush1.msra.mxu0 %v225
    %257 = vmatprep.subr.mxu0 0.0
    %258 = vmatpush1.msra.mxu0 %v226
    %259 = vmatprep.subr.mxu0 0.0
    %260 = vmatpush1.msra.mxu0 %v227
    %261 = vmatprep.subr.mxu0 0.0
    %262 = vmatpush1.msra.mxu0 %v228
    %263 = vmatprep.subr.mxu0 0.0
    %264 = vmatpush1.msra.mxu0 %v229
    %265 = vmatprep.subr.mxu0 0.0
    %266 = vmatpush1.msra.mxu0 %v230
    %267 = vmatprep.subr.mxu0 0.0
    %268 = vmatpush1.msra.mxu0 %v231
    %269 = vmatprep.subr.mxu0 0.0
    %270 = vmatpush1.msra.mxu0 0.0
    %271 = vmatprep.subr.mxu0 0.0
    %272 = vmatpush1.msra.mxu0 0.0
    %273 = vmatprep.subr.mxu0 0.0
    %274 = vmatpush1.msra.mxu0 0.0
    %275 = vmatprep.subr.mxu0 0.0
    %276 = vmatpush1.msra.mxu0 0.0
    %277 = vmatprep.subr.mxu0 0.0
    %278 = vmatpush1.msra.mxu0 0.0
    %279 = vmatprep.subr.mxu0 0.0
    %280 = vmatpush1.msra.mxu0 0.0
    %281 = vmatprep.subr.mxu0 0.0
    %282 = vmatpush1.msra.mxu0 0.0
    %283 = vmatprep.subr.mxu0 0.0
    %284 = vmatpush1.msra.mxu0 0.0
    %285 = vmatprep.subr.mxu0 0.0
    %286 = vmatpush1.msra.mxu0 0.0
    %287 = vmatprep.subr.mxu0 0.0
    %288 = vmatpush1.msra.mxu0 0.0
    %289 = vmatprep.subr.mxu0 0.0
    %290 = vmatpush1.msra.mxu0 0.0
    %291 = vmatprep.subr.mxu0 0.0
    %292 = vmatpush1.msra.mxu0 0.0
    %293 = vmatprep.subr.mxu0 0.0
    %294 = vmatpush1.msra.mxu0 0.0
    %295 = vmatprep.subr.mxu0 0.0
    %296 = vmatpush1.msra.mxu0 0.0
    %297 = vmatprep.subr.mxu0 0.0
    %298 = vmatpush1.msra.mxu0 0.0
    %299 = vmatprep.subr.mxu0 0.0
    %300 = vmatpush1.msra.mxu0 0.0
    %301 = vmatprep.mubr.f32.mxu0 0.0
    %302 = vmatmul.mubr.f32.gmra.mrb[0].mxu0 %v214
    %v303 = vpop.f32.mrb[0].mxu0
    %v304 = vadd.f32 %v236, %v303
    %v305 = vpop.f32.mrb[0].mxu0
    %306 = vdwg.mxu0
    %v307 = vxor.u32 %v304, 2147483648
    %v308 = vmul.f32 %v307, 1.442695
    %v309 = vpow.pop %v308
    %v310 = vadd.f32 %v309, 1.0
    %v311 = vrcp.pop %v310
    %v312 = vmul.f32 1.0, %v311
    %313 = vst [vmem:[#allocation5] sm:$0xff] %v312
    // Predicated region
    $region18: #{net_forward.1} parent=1 // pred_check
      _
    $region19: #{net_forward.1} parent=1 // pred_check_branch
      %315 = sbr.rel (0) target = $region21
    $region20: #{net_forward.1} parent=1 // pred_region
      %s317 = ssub.s32 128, 128
      %318 = vsyncadd [#allocation4], %s317
      %s320 = sshll.u32 [#allocation5], 4
      %s321 = int_to_ptr.vmem [resolvable:$true] %s320
      %323 = dma.vmem_to_hbm [thread:$0]  %s321, 128, %s3, [#allocation4]
    $region21: #{net_forward.1} parent=1 // pred_fallthru
      _
    // Predicated region
    $region22: #{net_forward.1} parent=1 // pred_check
      _
    $region23: #{net_forward.1} parent=1 // pred_check_branch
      %325 = sbr.rel (0) target = $region25
    $region24: #{net_forward.1} parent=1 // pred_region
      %326 = dma.done [#allocation4], 128
    $region25: #{net_forward.1} parent=1 // pred_fallthru
      _
    %327 = vsyncpa [#allocation3], 1
    %328 = vsyncpa [#allocation4], 1

</llo_original>
